<compile_context>
chip_gen: v5e
topology: v5e:2x2
jax: 0.10.0
libtpu: 0.0.40
codegen_flags: <defaults>
</compile_context>

<pallas_src>
import functools

import jax
import jax.numpy as jnp
from jax.experimental import pallas as pl
from jax.experimental.pallas import tpu as pltpu


def _round_up(a: int, b: int) -> int:
    return (a + b - 1) // b * b


def wap_kernel(x_ref, w_ref, b_ref, pos_ref, out_ref, acc_ref, s_ref, *, inv_n):
    """Single-pass fused gate+message weighted-mean reduction over node tiles.

    x_ref   : [TILE_N, D_in]  current node tile
    w_ref   : [D_in, P]       fused [gate | message | pad] weights (resident)
    b_ref   : [1, P]          fused bias row (resident)
    pos_ref : [TILE_N, 1]     per-node weights (0 on padded rows)
    out_ref : [1, P]          output block (same block across the whole grid)
    acc_ref : [1, P] VMEM     running sum of w_i * y_i
    s_ref   : [1, 1] VMEM     running sum of w_i  (the alpha normalizer)
    """
    step = pl.program_id(0)

    @pl.when(step == 0)
    def _init():
        acc_ref[...] = jnp.zeros_like(acc_ref)
        s_ref[...] = jnp.zeros_like(s_ref)

    # One lane-dense MXU matmul covering gate (col 0) and message (cols 1..).
    y = jnp.dot(x_ref[...], w_ref[...], preferred_element_type=jnp.float32)
    y = y + b_ref[...]                                    # [T, P]

    # Unnormalized attention weight per node: pos * exp(gate).
    # Padded rows carry pos == 0, so they contribute nothing below.
    w = pos_ref[...] * jnp.exp(y[:, 0:1])                 # [T, 1]

    s_ref[...] += jnp.sum(w, axis=0, keepdims=True)       # S accumulator
    acc_ref[...] += jnp.sum(w * y, axis=0, keepdims=True)  # A accumulator [1, P]

    @pl.when(step == pl.num_programs(0) - 1)
    def _finalize():
        # Deferred normalization: out = A / (N_true * (S + 1e-10)).
        # This is one scalar reciprocal for the whole kernel, so we keep it
        # exact (approx buys nothing here) for tight parity with the reference.
        scale = pl.reciprocal(s_ref[...] + jnp.float32(1e-10)) * jnp.float32(inv_n)
        out_ref[...] = acc_ref[...] * scale


def weighted_attention_pooling(x, pos, wg, bg, wm, bm, *, tile_n=512):
    """x: [N, D_in] f32, pos: [N] f32, wg: [D_in, 1], bg: [1, 1],
    wm: [D_in, D_out], bm: [1, D_out].  Returns [D_out] f32."""
    n, d_in = x.shape
    d_out = wm.shape[1]

    # ---- Fused, lane-padded weights: [gate | message | zero pad] -> P cols ----
    p = _round_up(1 + d_out, 128)
    w_fused = jnp.zeros((d_in, p), jnp.float32)
    w_fused = w_fused.at[:, 0:1].set(wg.astype(jnp.float32))
    w_fused = w_fused.at[:, 1:1 + d_out].set(wm.astype(jnp.float32))
    b_fused = jnp.zeros((1, p), jnp.float32)
    b_fused = b_fused.at[0, 0].set(bg.reshape(()).astype(jnp.float32))
    b_fused = b_fused.at[0, 1:1 + d_out].set(bm.reshape(d_out).astype(jnp.float32))

    # ---- Tile over nodes; pad with zero rows (pos = 0 -> no contribution) ----
    tile_n = min(tile_n, _round_up(n, 8))
    n_pad = _round_up(n, tile_n)
    x_p = jnp.zeros((n_pad, d_in), jnp.float32).at[:n].set(x.astype(jnp.float32))
    pos_p = jnp.zeros((n_pad, 1), jnp.float32).at[:n, 0].set(pos.astype(jnp.float32))
    num_tiles = n_pad // tile_n

    kernel = functools.partial(wap_kernel, inv_n=float(1.0 / n))

    # VMEM budget: double-buffered x/pos tiles + resident fused W, bias, output
    # + accumulators, with generous headroom. Capped at 32 MiB (safe on
    # v5e/v6e/v7x scoped limits; v7x physical VMEM is 64 MiB).
    need = (2 * tile_n * (d_in + 1) * 4      # double-buffered x + pos tiles
            + (d_in + 2) * p * 4             # resident W_fused, bias, output
            + (p + 1) * 4)                   # accumulator scratch
    vmem_limit_bytes = int(min(32 * 1024 * 1024, max(4 * need, 4 * 1024 * 1024)))

    cost = pl.CostEstimate(
        flops=2 * n_pad * d_in * p + 4 * n_pad * p,
        transcendentals=n_pad,
        bytes_accessed=(n_pad * d_in + n_pad + d_in * p + 2 * p) * 4,
    )

    out = pl.pallas_call(
        kernel,
        out_shape=jax.ShapeDtypeStruct((1, p), jnp.float32),
        grid_spec=pltpu.PrefetchScalarGridSpec(
            num_scalar_prefetch=0,
            grid=(num_tiles,),
            in_specs=[
                pl.BlockSpec((tile_n, d_in), lambda i: (i, 0)),  # x tile (streamed)
                pl.BlockSpec((d_in, p), lambda i: (0, 0)),       # fused W (resident)
                pl.BlockSpec((1, p), lambda i: (0, 0)),          # fused bias
                pl.BlockSpec((tile_n, 1), lambda i: (i, 0)),     # pos tile
            ],
            out_specs=pl.BlockSpec((1, p), lambda i: (0, 0)),
            scratch_shapes=[
                pltpu.VMEM((1, p), jnp.float32),   # A accumulator
                pltpu.VMEM((1, 1), jnp.float32),   # S accumulator
            ],
        ),
        compiler_params=pltpu.CompilerParams(
            dimension_semantics=("arbitrary",),
            vmem_limit_bytes=vmem_limit_bytes,
        ),
        cost_estimate=cost,
    )(x_p, w_fused, b_fused, pos_p)

    # Strip the gate column and the lane padding.
    return out[0, 1:1 + d_out]


def _reference(x, pos, wg, bg, wm, bm):
    gate = x @ wg + bg                       # [N, 1]
    alpha = pos * jnp.exp(gate[:, 0])        # [N]
    alpha = alpha / (alpha.sum() + 1e-10)
    beta = x @ wm + bm                       # [N, D_out]
    return jnp.mean(alpha[:, None] * beta, axis=0)


if __name__ == "__main__":
    # Small shapes consistent with the module: N nodes, D_in features.
    # N=40 with tile_n=16 exercises multi-tile accumulation + zero-pos padding.
    N, D_IN, D_OUT = 40, 32, 16

    key = jax.random.PRNGKey(0)
    kx, kp, kwg, kwm = jax.random.split(key, 4)

    x = jax.random.normal(kx, (N, D_IN), dtype=jnp.float32)
    pos = jax.random.uniform(kp, (N,), dtype=jnp.float32)  # per-node weights

    # Deterministic (xavier-uniform-like) parameter init for gate_nn / message_nn.
    lim_g = (6.0 / (D_IN + 1)) ** 0.5
    wg = jax.random.uniform(kwg, (D_IN, 1), minval=-lim_g, maxval=lim_g,
                            dtype=jnp.float32)
    bg = jnp.zeros((1, 1), dtype=jnp.float32)

    lim_m = (6.0 / (D_IN + D_OUT)) ** 0.5
    wm = jax.random.uniform(kwm, (D_IN, D_OUT), minval=-lim_m, maxval=lim_m,
                            dtype=jnp.float32)
    bm = jnp.zeros((1, D_OUT), dtype=jnp.float32)

    out = weighted_attention_pooling(x, pos, wg, bg, wm, bm, tile_n=16)
    out = jax.block_until_ready(out)

    ref = _reference(x, pos, wg, bg, wm, bm)
    assert out.shape == (D_OUT,)
    assert jnp.allclose(out, ref, atol=2e-5, rtol=1e-4), "mismatch vs reference"

    print("KERNEL_OK")
</pallas_src>

<mosaic_0001>
module attributes {stable_mosaic.version = 11 : i64} {
  func.func @wap_kernel(%arg0: i32, %arg1: memref<16x32xf32, #tpu.memory_space<vmem>>, %arg2: memref<32x128xf32, #tpu.memory_space<vmem>>, %arg3: memref<1x128xf32, #tpu.memory_space<vmem>>, %arg4: memref<16x1xf32, #tpu.memory_space<vmem>>, %arg5: memref<1x128xf32, #tpu.memory_space<vmem>>, %arg6: memref<1x128xf32, #tpu.memory_space<vmem>>, %arg7: memref<1x1xf32, #tpu.memory_space<vmem>>) attributes {dimension_semantics = [#tpu.dimension_semantics<arbitrary>], iteration_bounds = array<i64: 3>, scalar_prefetch = 0 : i64, scratch_operands = 2 : i64, tpu.core_type = #tpu.core_type<tc>, window_params = [{transform_indices = @transform_0, window_bounds = array<i64: 16, 32>}, {pipeline_mode = #tpu.pipeline_mode<synchronous>, transform_indices = @transform_1, window_bounds = array<i64: 32, 128>}, {pipeline_mode = #tpu.pipeline_mode<synchronous>, transform_indices = @transform_2, window_bounds = array<i64: 1, 128>}, {transform_indices = @transform_3, window_bounds = array<i64: 16, 1>}, {pipeline_mode = #tpu.pipeline_mode<synchronous>, transform_indices = @transform_4, window_bounds = array<i64: 1, 128>}]} {
    %c0_i32 = arith.constant 0 : i32
    %0 = arith.cmpi eq, %arg0, %c0_i32 : i32
    %1 = arith.extui %0 : i1 to i32
    %c0_i32_0 = arith.constant 0 : i32
    %2 = arith.cmpi ne, %1, %c0_i32_0 : i32
    scf.if %2 {
      %cst_19 = arith.constant 0.000000e+00 : f32
      %28 = vector.broadcast %cst_19 : f32 to vector<1x128xf32>
      %c0_20 = arith.constant 0 : index
      %c0_21 = arith.constant 0 : index
      %29 = vector.load %arg6[%c0_20, %c0_21] : memref<1x128xf32, #tpu.memory_space<vmem>>, vector<1x128xf32>
      tpu.vector_store %arg6[%c0_20, %c0_21], %28 {strides = array<i32>} : memref<1x128xf32, #tpu.memory_space<vmem>>, vector<1x128xf32>,
      %cst_22 = arith.constant 0.000000e+00 : f32
      %30 = vector.broadcast %cst_22 : f32 to vector<1x1xf32>
      %c0_23 = arith.constant 0 : index
      %c0_24 = arith.constant 0 : index
      %31 = vector.load %arg7[%c0_23, %c0_24] : memref<1x1xf32, #tpu.memory_space<vmem>>, vector<1x1xf32>
      tpu.vector_store %arg7[%c0_23, %c0_24], %30 {strides = array<i32>} : memref<1x1xf32, #tpu.memory_space<vmem>>, vector<1x1xf32>,
    } else {
    }
    %c0 = arith.constant 0 : index
    %c0_1 = arith.constant 0 : index
    %3 = vector.load %arg1[%c0, %c0_1] : memref<16x32xf32, #tpu.memory_space<vmem>>, vector<16x32xf32>
    %c0_2 = arith.constant 0 : index
    %c0_3 = arith.constant 0 : index
    %4 = vector.load %arg2[%c0_2, %c0_3] : memref<32x128xf32, #tpu.memory_space<vmem>>, vector<32x128xf32>
    %cst = arith.constant dense<0.000000e+00> : vector<16x128xf32>
    %5 = tpu.matmul %3, %4, %cst {dimension_numbers = #tpu.dot_dimension_numbers<[1], [0], [0], [1], [0, 0, 1, 1], [], []>} : vector<16x32xf32>, vector<32x128xf32>, vector<16x128xf32> -> vector<16x128xf32>
    %c0_4 = arith.constant 0 : index
    %c0_5 = arith.constant 0 : index
    %6 = vector.load %arg3[%c0_4, %c0_5] : memref<1x128xf32, #tpu.memory_space<vmem>>, vector<1x128xf32>
    %7 = vector.broadcast %6 : vector<1x128xf32> to vector<16x128xf32>
    %8 = arith.addf %5, %7 : vector<16x128xf32>
    %c0_6 = arith.constant 0 : index
    %c0_7 = arith.constant 0 : index
    %9 = vector.load %arg4[%c0_6, %c0_7] : memref<16x1xf32, #tpu.memory_space<vmem>>, vector<16x1xf32>
    %10 = vector.extract_strided_slice %8 {offsets = [0, 0], sizes = [16, 1], strides = [1, 1]} : vector<16x128xf32> to vector<16x1xf32>
    %11 = math.exp %10 : vector<16x1xf32>
    %12 = arith.mulf %9, %11 : vector<16x1xf32>
    %c0_8 = arith.constant 0 : index
    %c0_9 = arith.constant 0 : index
    %13 = vector.load %arg7[%c0_8, %c0_9] : memref<1x1xf32, #tpu.memory_space<vmem>>, vector<1x1xf32>
    %cst_10 = arith.constant dense<0.000000e+00> : vector<1xf32>
    %14 = vector.multi_reduction <add>, %12, %cst_10 [0] : vector<16x1xf32> to vector<1xf32>
    %15 = vector.shape_cast %14 : vector<1xf32> to vector<1x1xf32>
    %16 = arith.addf %13, %15 : vector<1x1xf32>
    %c0_11 = arith.constant 0 : index
    %c0_12 = arith.constant 0 : index
    %17 = vector.load %arg7[%c0_11, %c0_12] : memref<1x1xf32, #tpu.memory_space<vmem>>, vector<1x1xf32>
    tpu.vector_store %arg7[%c0_11, %c0_12], %16 {strides = array<i32>} : memref<1x1xf32, #tpu.memory_space<vmem>>, vector<1x1xf32>,
    %c0_13 = arith.constant 0 : index
    %c0_14 = arith.constant 0 : index
    %18 = vector.load %arg6[%c0_13, %c0_14] : memref<1x128xf32, #tpu.memory_space<vmem>>, vector<1x128xf32>
    %19 = vector.broadcast %12 : vector<16x1xf32> to vector<16x128xf32>
    %20 = arith.mulf %19, %8 : vector<16x128xf32>
    %cst_15 = arith.constant dense<0.000000e+00> : vector<128xf32>
    %21 = vector.multi_reduction <add>, %20, %cst_15 [0] : vector<16x128xf32> to vector<128xf32>
    %22 = vector.shape_cast %21 : vector<128xf32> to vector<1x128xf32>
    %23 = arith.addf %18, %22 : vector<1x128xf32>
    %c0_16 = arith.constant 0 : index
    %c0_17 = arith.constant 0 : index
    %24 = vector.load %arg6[%c0_16, %c0_17] : memref<1x128xf32, #tpu.memory_space<vmem>>, vector<1x128xf32>
    tpu.vector_store %arg6[%c0_16, %c0_17], %23 {strides = array<i32>} : memref<1x128xf32, #tpu.memory_space<vmem>>, vector<1x128xf32>,
    %c2_i32 = arith.constant 2 : i32
    %25 = arith.cmpi eq, %arg0, %c2_i32 : i32
    %26 = arith.extui %25 : i1 to i32
    %c0_i32_18 = arith.constant 0 : i32
    %27 = arith.cmpi ne, %26, %c0_i32_18 : i32
    scf.if %27 {
      %c0_19 = arith.constant 0 : index
      %c0_20 = arith.constant 0 : index
      %28 = vector.load %arg7[%c0_19, %c0_20] : memref<1x1xf32, #tpu.memory_space<vmem>>, vector<1x1xf32>
      %cst_21 = arith.constant 1.000000e-10 : f32
      %29 = vector.broadcast %cst_21 : f32 to vector<1x1xf32>
      %30 = arith.addf %28, %29 : vector<1x1xf32>
      %31 = tpu.reciprocal %30 : vector<1x1xf32> -> vector<1x1xf32>
      %cst_22 = arith.constant 2.500000e-02 : f32
      %32 = vector.broadcast %cst_22 : f32 to vector<1x1xf32>
      %33 = arith.mulf %31, %32 : vector<1x1xf32>
      %c0_23 = arith.constant 0 : index
      %c0_24 = arith.constant 0 : index
      %34 = vector.load %arg6[%c0_23, %c0_24] : memref<1x128xf32, #tpu.memory_space<vmem>>, vector<1x128xf32>
      %35 = vector.broadcast %33 : vector<1x1xf32> to vector<1x128xf32>
      %36 = arith.mulf %34, %35 : vector<1x128xf32>
      %c0_25 = arith.constant 0 : index
      %c0_26 = arith.constant 0 : index
      %37 = vector.load %arg5[%c0_25, %c0_26] : memref<1x128xf32, #tpu.memory_space<vmem>>, vector<1x128xf32>
      tpu.vector_store %arg5[%c0_25, %c0_26], %36 {strides = array<i32>} : memref<1x128xf32, #tpu.memory_space<vmem>>, vector<1x128xf32>,
    } else {
    }
    return
  }
  func.func @transform_0(%arg0: i32) -> (i32, i32) {
    %c0_i32 = arith.constant 0 : i32
    %c0_i32_0 = arith.constant 0 : i32
    return %arg0, %c0_i32 : i32, i32
  }
  func.func @transform_1(%arg0: i32) -> (i32, i32) {
    %c0_i32 = arith.constant 0 : i32
    %c0_i32_0 = arith.constant 0 : i32
    %c0_i32_1 = arith.constant 0 : i32
    return %c0_i32, %c0_i32_0 : i32, i32
  }
  func.func @transform_2(%arg0: i32) -> (i32, i32) {
    %c0_i32 = arith.constant 0 : i32
    %c0_i32_0 = arith.constant 0 : i32
    %c0_i32_1 = arith.constant 0 : i32
    return %c0_i32, %c0_i32_0 : i32, i32
  }
  func.func @transform_3(%arg0: i32) -> (i32, i32) {
    %c0_i32 = arith.constant 0 : i32
    %c0_i32_0 = arith.constant 0 : i32
    return %arg0, %c0_i32 : i32, i32
  }
  func.func @transform_4(%arg0: i32) -> (i32, i32) {
    %c0_i32 = arith.constant 0 : i32
    %c0_i32_0 = arith.constant 0 : i32
    %c0_i32_1 = arith.constant 0 : i32
    return %c0_i32, %c0_i32_0 : i32, i32
  }
}

</mosaic_0001>

<llo_original>
// kernel: tpu_custom_call.1
$region0: #{tpu_custom_call.1}
  #allocation0 [shape = 'u32[]', space=smem, size = 0x4, offset = 0x4, fixed_abs, tag = 'smem constant byte address 0x4 - core index']
  #allocation1 [shape = 'u32[72,128]{1,0:T(1,128)}', space=vmem, size = 0x9000, scoped, tag = 'internal scratch']
  #allocation2 [shape = 'f32[1,128]{1,0:T(1,128)}', space=vmem, size = 0x200, scoped, tag = 'scratch operand']
  #allocation3 [shape = 'f32[1,1]{1,0:T(1,128)}', space=vmem, size = 0x200, scoped, tag = 'scratch operand']
  %s0 = inlined_call_operand.vmem [shape: f32[48,32], index: 0, kind: input, shape index: {}]
  %s1 = inlined_call_operand.vmem [shape: f32[32,128], index: 1, kind: input, shape index: {}]
  %s2 = inlined_call_operand.vmem [shape: f32[1,128], index: 2, kind: input, shape index: {}]
  %s3 = inlined_call_operand.vmem [shape: f32[48,1], index: 3, kind: input, shape index: {}]
  %s4 = inlined_call_operand.hbm [shape: f32[1,128], index: 4, kind: output, shape index: {}]
  %s5 = sld [smem:[#allocation0]]
  $region57: #{tpu_custom_call.1} parent=0
    _
  %s7 = ssub.s32 1, %s5
  %s8 = scalar_select 0, %s7, %s5
  $region1: #{tpu_custom_call.1} parent=0
    #allocation4 [shape = 'u8[512]{0}', space=vmem, size = 0x400, scoped, tag = 'output window, operand 0, single buffered']
    #allocation5 [shape = 's32[2]{0}', space=sflag, size = 0x8, scoped, tag = 'scoped memory for tpu_custom_call.1']
    %9 = vsyncpa [#allocation5], 0
    loop: start=0, step=1, limit=5
    $region2: #{tpu_custom_call.1} parent=1 // loop_pre_header
      _
    $region3: #{tpu_custom_call.1} parent=1 // loop_header
      %s11 = sphi 0, %s15
      %p12 = scmp.ge.s32.totalorder %s11, 5
      %s21 = sphi 0, %s23
      %s24 = sphi 0, %s21
      %s25 = sphi 0, %s24
      %s41 = sphi 0, %s25
      %s45 = sphi 0, %s45
      %s47 = sphi 0, %s45
      %s48 = sphi 0, %s47
      %s62 = sphi 0, %s48
      %s66 = sphi 0, %s66
      %s68 = sphi 0, %s66
      %s69 = sphi 0, %s68
      %s83 = sphi 0, %s69
      %s89 = sphi 0, %s91
      %s92 = sphi 0, %s89
      %s93 = sphi 0, %s92
      %s109 = sphi 0, %s93
      %s113 = sphi 0, %s113
      %s115 = sphi 0, %s113
      %s116 = sphi 0, %s115
      %s130 = sphi 0, %s116
    $region4: #{tpu_custom_call.1} parent=1 // loop_header_branch
      %14 = sbr.rel (%p12) target = $region8
    $region5: #{tpu_custom_call.1} parent=1 // loop_body
      %s16 = ssub.s32 %s11, 1
      %s17 = ssub.s32 %s11, 2
      %s18 = sadd.s32 %s11, 1
      %s19 = ssub.s32 %s11, %s18
      %p20 = scmp.eq.s32.totalorder %s19, 0
      %s22 = sadd.s32 %s21, 1
      %s23 = scalar_select %p20, %s21, %s22
      %p26 = pneg %p20
      %p27 = scmp.eq.s32.totalorder %s11, 2
      %p28 = por %p26, %p27
      %p29 = scmp.ne.s32.totalorder %s21, %s24
      %p30 = scmp.eq.s32.totalorder %s11, 0
      %p31 = por %p29, %p30
      %p32 = scmp.ne.s32.totalorder %s21, %s24
      %p33 = scmp.eq.s32.totalorder %s16, 2
      %p34 = por %p32, %p33
      %p35 = scmp.ne.s32.totalorder %s24, %s25
      %p36 = scmp.eq.s32.totalorder %s16, 0
      %p37 = por %p35, %p36
      %p38 = scmp.ne.s32.totalorder %s24, %s25
      %p39 = scmp.eq.s32.totalorder %s17, 2
      %p40 = por %p38, %p39
      %p42 = scmp.ne.s32.totalorder %s25, %s41
      %p43 = scmp.eq.s32.totalorder %s17, 0
      %p44 = por %p42, %p43
      %s46 = sadd.s32 %s45, 1
      %p49 = scmp.eq.s32.totalorder %s11, 2
      %p50 = scmp.ne.s32.totalorder %s45, %s47
      %p51 = scmp.eq.s32.totalorder %s11, 0
      %p52 = por %p50, %p51
      %p53 = scmp.ne.s32.totalorder %s45, %s47
      %p54 = scmp.eq.s32.totalorder %s16, 2
      %p55 = por %p53, %p54
      %p56 = scmp.ne.s32.totalorder %s47, %s48
      %p57 = scmp.eq.s32.totalorder %s16, 0
      %p58 = por %p56, %p57
      %p59 = scmp.ne.s32.totalorder %s47, %s48
      %p60 = scmp.eq.s32.totalorder %s17, 2
      %p61 = por %p59, %p60
      %p63 = scmp.ne.s32.totalorder %s48, %s62
      %p64 = scmp.eq.s32.totalorder %s17, 0
      %p65 = por %p63, %p64
      %s67 = sadd.s32 %s66, 1
      %p70 = scmp.eq.s32.totalorder %s11, 2
      %p71 = scmp.ne.s32.totalorder %s66, %s68
      %p72 = scmp.eq.s32.totalorder %s11, 0
      %p73 = por %p71, %p72
      %p74 = scmp.ne.s32.totalorder %s66, %s68
      %p75 = scmp.eq.s32.totalorder %s16, 2
      %p76 = por %p74, %p75
      %p77 = scmp.ne.s32.totalorder %s68, %s69
      %p78 = scmp.eq.s32.totalorder %s16, 0
      %p79 = por %p77, %p78
      %p80 = scmp.ne.s32.totalorder %s68, %s69
      %p81 = scmp.eq.s32.totalorder %s17, 2
      %p82 = por %p80, %p81
      %p84 = scmp.ne.s32.totalorder %s69, %s83
      %p85 = scmp.eq.s32.totalorder %s17, 0
      %p86 = por %p84, %p85
      %s87 = ssub.s32 %s11, %s18
      %p88 = scmp.eq.s32.totalorder %s87, 0
      %s90 = sadd.s32 %s89, 1
      %s91 = scalar_select %p88, %s89, %s90
      %p94 = pneg %p88
      %p95 = scmp.eq.s32.totalorder %s11, 2
      %p96 = por %p94, %p95
      %p97 = scmp.ne.s32.totalorder %s89, %s92
      %p98 = scmp.eq.s32.totalorder %s11, 0
      %p99 = por %p97, %p98
      %p100 = scmp.ne.s32.totalorder %s89, %s92
      %p101 = scmp.eq.s32.totalorder %s16, 2
      %p102 = por %p100, %p101
      %p103 = scmp.ne.s32.totalorder %s92, %s93
      %p104 = scmp.eq.s32.totalorder %s16, 0
      %p105 = por %p103, %p104
      %p106 = scmp.ne.s32.totalorder %s92, %s93
      %p107 = scmp.eq.s32.totalorder %s17, 2
      %p108 = por %p106, %p107
      %p110 = scmp.ne.s32.totalorder %s93, %s109
      %p111 = scmp.eq.s32.totalorder %s17, 0
      %p112 = por %p110, %p111
      %s114 = sadd.s32 %s113, 1
      %p117 = scmp.eq.s32.totalorder %s11, 2
      %p118 = scmp.ne.s32.totalorder %s113, %s115
      %p119 = scmp.eq.s32.totalorder %s11, 0
      %p120 = por %p118, %p119
      %p121 = scmp.ne.s32.totalorder %s113, %s115
      %p122 = scmp.eq.s32.totalorder %s16, 2
      %p123 = por %p121, %p122
      %p124 = scmp.ne.s32.totalorder %s115, %s116
      %p125 = scmp.eq.s32.totalorder %s16, 0
      %p126 = por %p124, %p125
      %p127 = scmp.ne.s32.totalorder %s115, %s116
      %p128 = scmp.eq.s32.totalorder %s17, 2
      %p129 = por %p127, %p128
      %p131 = scmp.ne.s32.totalorder %s116, %s130
      %p132 = scmp.eq.s32.totalorder %s17, 0
      %p133 = por %p131, %p132
      %p134 = scmp.le.s32.totalorder 1, %s11
      %p135 = scmp.lt.s32.totalorder %s11, 4
      %p136 = pnand %p134, %p135
      %p137 = pneg %p136
      // Predicated region
      $region9: #{tpu_custom_call.1} parent=5 // pred_check
        _
      $region10: #{tpu_custom_call.1} parent=5 // pred_check_branch
        %139 = sbr.rel (%p136) target = $region12
      $region11: #{tpu_custom_call.1} parent=5 // pred_region
        %s140 = ssub.s32 %s11, 1
        // Predicated region
        $region13: #{tpu_custom_call.1} parent=11 // pred_check
          %p141 = pneg %p58
        $region14: #{tpu_custom_call.1} parent=11 // pred_check_branch
          %143 = sbr.rel (%p141) target = $region16
        $region15: #{tpu_custom_call.1} parent=11 // pred_region
          _
        $region16: #{tpu_custom_call.1} parent=11 // pred_fallthru
          _
        // Predicated region
        $region17: #{tpu_custom_call.1} parent=11 // pred_check
          %p144 = pneg %p79
        $region18: #{tpu_custom_call.1} parent=11 // pred_check_branch
          %146 = sbr.rel (%p144) target = $region20
        $region19: #{tpu_custom_call.1} parent=11 // pred_region
          _
        $region20: #{tpu_custom_call.1} parent=11 // pred_fallthru
          _
      $region12: #{tpu_custom_call.1} parent=5 // pred_fallthru
        _
      %p147 = scmp.lt.s32.totalorder %s11, 3
      // Predicated region
      $region21: #{tpu_custom_call.1} parent=5 // pred_check
        %p148 = pneg %p147
      $region22: #{tpu_custom_call.1} parent=5 // pred_check_branch
        %150 = sbr.rel (%p148) target = $region24
      $region23: #{tpu_custom_call.1} parent=5 // pred_region
        // Predicated region
        $region25: #{tpu_custom_call.1} parent=23 // pred_check
          %p151 = pneg %p31
        $region26: #{tpu_custom_call.1} parent=23 // pred_check_branch
          %153 = sbr.rel (%p151) target = $region28
        $region27: #{tpu_custom_call.1} parent=23 // pred_region
          %s154 = smul.u32 2, %s11
          %p155 = scmp.lt.s32.totalorder %s154, 5
          %s156 = scalar_select %p155, %s154, 5
          %s157 = smul.addr %s156, 8
          %s158 = scalar_lea.vmem %s0, %s157
          %s159 = smul.u32 2, %s11
        $region28: #{tpu_custom_call.1} parent=23 // pred_fallthru
          _
        // Predicated region
        $region29: #{tpu_custom_call.1} parent=23 // pred_check
          %p160 = pneg %p99
        $region30: #{tpu_custom_call.1} parent=23 // pred_check_branch
          %162 = sbr.rel (%p160) target = $region32
        $region31: #{tpu_custom_call.1} parent=23 // pred_region
          %s163 = smul.u32 2, %s11
          %p164 = scmp.lt.s32.totalorder %s163, 5
          %s165 = scalar_select %p164, %s163, 5
          %s166 = smul.addr %s165, 8
          %s167 = scalar_lea.vmem %s3, %s166
          %s168 = smul.u32 2, %s11
        $region32: #{tpu_custom_call.1} parent=23 // pred_fallthru
          _
      $region24: #{tpu_custom_call.1} parent=5 // pred_fallthru
        _
      %p169 = scmp.le.s32.totalorder 1, %s11
      %p170 = scmp.lt.s32.totalorder %s11, 4
      %p171 = pnand %p169, %p170
      %p172 = pneg %p171
      // Predicated region
      $region33: #{tpu_custom_call.1} parent=5 // pred_check
        _
      $region34: #{tpu_custom_call.1} parent=5 // pred_check_branch
        %174 = sbr.rel (%p171) target = $region36
      $region35: #{tpu_custom_call.1} parent=5 // pred_region
        %s175 = ssub.s32 %s11, 1
        %s176 = smul.u32 2, %s16
        %p177 = scmp.lt.s32.totalorder %s176, 5
        %s178 = scalar_select %p177, %s176, 5
        %s179 = smul.addr %s178, 8
        %s180 = scalar_lea.vmem %s0, %s179
        %p181 = pneg %p37
        %p182 = pneg %p34
        %p183 = pneg %p58
        %p184 = pneg %p55
        %p185 = pneg %p79
        %p186 = pneg %p76
        %s187 = smul.u32 2, %s16
        %p188 = scmp.lt.s32.totalorder %s187, 5
        %s189 = scalar_select %p188, %s187, 5
        %s190 = smul.addr %s189, 8
        %s191 = scalar_lea.vmem %s3, %s190
        %p192 = pneg %p105
        %p193 = pneg %p102
        %p194 = pneg %p126
        %p195 = pneg %p123
        %s196 = smul.u32 2, %s16
        %p197 = scmp.lt.s32.totalorder %s196, 5
        %s198 = scalar_select %p197, %s196, 5
        %s199 = smul.addr %s198, 8
        %s200 = scalar_lea.vmem %s0, %s199
        %s201 = smul.u32 2, %s16
        %s202 = smul.u32 2, %s16
        %p203 = scmp.lt.s32.totalorder %s202, 5
        %s204 = scalar_select %p203, %s202, 5
        %s205 = smul.addr %s204, 8
        %s206 = scalar_lea.vmem %s3, %s205
        %s207 = smul.u32 2, %s16
        %p208 = scmp.eq.s32.totalorder %s16, 0
        // Predicated region
        $region37: #{tpu_custom_call.1} parent=35 // pred_check
          %p209 = pneg %p208
        $region38: #{tpu_custom_call.1} parent=35 // pred_check_branch
          %211 = sbr.rel (%p209) target = $region40
        $region39: #{tpu_custom_call.1} parent=35 // pred_region
          %212 = vst [vmem:[#allocation2] sm:$0x1] 0.0
          %vm213 = vcmask 0
          %214 = vst.msk [vmem:[#allocation3] sm:$0x1] %vm213, 0.0
        $region40: #{tpu_custom_call.1} parent=35 // pred_fallthru
          _
        %v215 = vld [vmem:[%s200] sm:$0xff]
        %v216 = vld [vmem:[%s200 + $0x8] sm:$0xff]
        %v217 = vld [vmem:[%s1] sm:$0xff]
        %v218 = vld [vmem:[%s1 + $0x8] sm:$0xff]
        %v219 = vld [vmem:[%s1 + $0x10] sm:$0xff]
        %v220 = vld [vmem:[%s1 + $0x18] sm:$0xff]
        %v221 = vld [vmem:[%s2] sm:$0x1]
        %v223 = vperm.slane %v221, 0
        %vm225 = vcmask 261120
        %v227 = vsel %vm225, %v215, 0
        %v230 = vsel %vm225, %v216, 0
        %232 = vmatpush.msra.mxu0 0.0
        %233 = vmatpush.msra.mxu0 0.0
        %234 = vmatpush.msra.mxu0 0.0
        %235 = vmatpush.msra.mxu0 0.0
        %236 = vmatpush.msra.mxu0 0.0
        %237 = vmatpush.msra.mxu0 0.0
        %238 = vmatpush.msra.mxu0 0.0
        %239 = vmatpush.msra.mxu0 0.0
        %240 = vmatpush.msra.mxu0 0.0
        %241 = vmatpush.msra.mxu0 0.0
        %242 = vmatpush.msra.mxu0 0.0
        %243 = vmatpush.msra.mxu0 0.0
        %244 = vmatpush.msra.mxu0 %v220
        %245 = vmatpush.msra.mxu0 %v219
        %246 = vmatpush.msra.mxu0 %v218
        %247 = vmatpush.msra.mxu0 %v217
        %248 = vmatmul.f32.gmra.mxu0 %v227
        %v249 = vpop.f32.mrf.mxu0
        %v250 = vadd.f32 %v223, %v249
        %251 = vmatmul.f32.gmra.mxu0 %v230
        %v252 = vpop.f32.mrf.mxu0
        %v253 = vadd.f32 %v223, %v252
        %254 = vdwg.mxu0
        %v255 = vld [vmem:[%s206] sm:$0xff]
        %v256 = vld [vmem:[%s206 + $0x8] sm:$0xff]
        %v257 = vmul.f32 %v250, 1.442695
        %v258 = vpow.pop %v257
        %v259 = vmul.f32 %v253, 1.442695
        %v260 = vpow.pop %v259
        %v261 = vmul.f32 %v255, %v258
        %v262 = vmul.f32 %v256, %v260
        %v263 = vld [vmem:[#allocation3] sm:$0x1]
        %vm264 = vcmask 7168
        %v265 = vsel %vm264, %v261, 0.0
        %v266 = vsel %vm264, %v262, 0.0
        %v267 = vadd.f32 %v265, %v266
        %v268 = vrot.slane %v267, 4
        %v269 = vadd.f32 %v267, %v268
        %v270 = vrot.slane %v269, 2
        %v271 = vadd.f32 %v269, %v270
        %v272 = vrot.slane %v271, 1
        %v273 = vadd.f32 %v271, %v272
        %v274 = vadd.f32 %v263, %v273
        %vm275 = vcmask 0
        %276 = vst.msk [vmem:[#allocation3] sm:$0x1] %vm275, %v274
        %v277 = vld [vmem:[#allocation2] sm:$0x1]
        %279 = vset.pattern.permute.xlu0 0
        %280 = vperm.xlu0 %279, %v261
        %v281 = vpop.permute.xlu0 %280
        %284 = vset.pattern.permute.xlu0 0
        %285 = vperm.xlu0 %284, %v262
        %v286 = vpop.permute.xlu0 %285
        %v288 = vmul.f32 %v281, %v250
        %v289 = vmul.f32 %v286, %v253
        %v290 = vadd.f32 %v288, %v289
        %v291 = vrot.slane %v290, 4
        %v292 = vadd.f32 %v290, %v291
        %v293 = vrot.slane %v292, 2
        %v294 = vadd.f32 %v292, %v293
        %v295 = vrot.slane %v294, 1
        %v296 = vadd.f32 %v294, %v295
        %v297 = vadd.f32 %v277, %v296
        %298 = vst [vmem:[#allocation2] sm:$0x1] %v297
        %p299 = scmp.eq.s32.totalorder %s16, 2
        // Predicated region
        $region41: #{tpu_custom_call.1} parent=35 // pred_check
          %p300 = pneg %p299
        $region42: #{tpu_custom_call.1} parent=35 // pred_check_branch
          %302 = sbr.rel (%p300) target = $region44
        $region43: #{tpu_custom_call.1} parent=35 // pred_region
          %v303 = vld [vmem:[#allocation3] sm:$0x1]
          %v304 = vadd.f32 %v303, 1e-10
          %v305 = vrcp.pop %v304
          %v306 = vmul.f32 %v304, %v305
          %v307 = vsub.f32 1.0, %v306
          %v308 = vmul.f32 %v305, %v307
          %v309 = vadd.f32 %v305, %v308
          %vm310 = vweird.f32 %v304
          %vm311 = vweird.f32 %v305
          %vm312 = vmor %vm310, %vm311
          %v313 = vsel %vm312, %v305, %v309
          %v314 = vand.u32 2147483647, %v304
          %vm315 = vcmp.eq.f32.partialorder %v314, 8.507059e+37
          %v316 = vand.u32 %v304, 2147483648
          %v317 = vor.u32 1.1754944e-38, %v316
          %v318 = vsel %vm315, %v317, %v313
          %v319 = vmul.f32 %v318, 0.025
          %v320 = vld [vmem:[#allocation2] sm:$0x1]
          %322 = vset.pattern.permute.xlu0 0
          %323 = vperm.xlu0 %322, %v319
          %v324 = vpop.permute.xlu0 %323
          %v326 = vperm.slane %v324, 0
          %v327 = vmul.f32 %v320, %v326
          %328 = vst [vmem:[#allocation4] sm:$0x1] %v327
        $region44: #{tpu_custom_call.1} parent=35 // pred_fallthru
          _
        // Predicated region
        $region45: #{tpu_custom_call.1} parent=35 // pred_check
          %p329 = pneg %p123
        $region46: #{tpu_custom_call.1} parent=35 // pred_check_branch
          %331 = sbr.rel (%p329) target = $region48
        $region47: #{tpu_custom_call.1} parent=35 // pred_region
          %333 = vsyncadd [#allocation5], 0
          %s335 = sshll.u32 [#allocation4], 4
          %s336 = int_to_ptr.vmem [resolvable:$true] %s335
          %s337 = sshll.u32 %s4, 4
          %s338 = int_to_ptr.hbm [resolvable:$true] %s337
          %340 = dma.vmem_to_hbm [thread:$0]  %s336, 16, %s338, [#allocation5]
        $region48: #{tpu_custom_call.1} parent=35 // pred_fallthru
          _
        // Predicated region
        $region49: #{tpu_custom_call.1} parent=35 // pred_check
          %p341 = pneg %p123
        $region50: #{tpu_custom_call.1} parent=35 // pred_check_branch
          %343 = sbr.rel (%p341) target = $region52
        $region51: #{tpu_custom_call.1} parent=35 // pred_region
          %345 = dma.done [#allocation5], 16
        $region52: #{tpu_custom_call.1} parent=35 // pred_fallthru
          _
      $region36: #{tpu_custom_call.1} parent=5 // pred_fallthru
        _
      %p346 = scmp.le.s32.totalorder 2, %s11
      // Predicated region
      $region53: #{tpu_custom_call.1} parent=5 // pred_check
        %p347 = pneg %p346
      $region54: #{tpu_custom_call.1} parent=5 // pred_check_branch
        %349 = sbr.rel (%p347) target = $region56
      $region55: #{tpu_custom_call.1} parent=5 // pred_region
        %s350 = ssub.s32 %s11, 2
      $region56: #{tpu_custom_call.1} parent=5 // pred_fallthru
        _
    $region6: #{tpu_custom_call.1} parent=1 // loop_footer
      %s15 = sadd.s32 1, %s11
    $region7: #{tpu_custom_call.1} parent=1 // loop_footer_branch
      %10 = sbr.rel target = $region3
    $region8: #{tpu_custom_call.1} parent=1 // loop_exit
      _
    %351 = vsyncpa [#allocation5], 1
    %s352 = scalar_lea.sflag [#allocation5], 1
    %353 = vsyncpa %s352, 1

</llo_original>
